<compile_context>
chip_gen: v7x
topology: tpu7x:2x2x1
jax: 0.10.0
libtpu: 0.0.40
codegen_flags: <defaults>
</compile_context>

<pallas_src>
import functools

import jax
import jax.numpy as jnp
from jax.experimental import pallas as pl
from jax.experimental.pallas import tpu as pltpu


def _nf_kernel(zt_ref, wt_ref, ut_ref, b_ref, o_ref, *, K):
    # zt_ref: [D, tn] lane-dense tile (batch samples along lanes).
    # wt_ref / ut_ref: full [D, K] (resident in VMEM).  b_ref: [K] in SMEM.
    z = zt_ref[...]                                   # [D, tn], kept in vregs
    wt = wt_ref[...]                                  # [D, K]
    ut = ut_ref[...]                                  # [D, K]
    # K is small & static -> unrolled.  For large K (>~16) switch to
    # lax.fori_loop to bound vreg live ranges.
    for k in range(K):
        w_k = wt[:, k:k + 1]                          # [D, 1]
        u_k = ut[:, k:k + 1]                          # [D, 1]
        b_k = b_ref[k]                                # scalar (SMEM)
        # z @ w_k.T per sample == sublane reduce over D -> [1, tn] lane-dense
        s = jnp.sum(z * w_k, axis=0, keepdims=True) + b_k
        z = z + u_k * jnp.tanh(s)                     # broadcast back to [D, tn]
    o_ref[...] = z                                    # single unmasked store


def _pick_tile(N):
    # Biggest lane-multiple tile (up to 2048) that still leaves >=2 grid steps
    # so the parallel axis can shard across v7x's two TensorCores.
    for cand in (2048, 1024, 512, 256, 128):
        if N >= 2 * cand:
            return cand
    return 128


def normalizing_flow(z, w, u, b, *, tn=None):
    """z: [N, D] f32; w, u: [K, D] f32; b: [K] f32 -> [N, D] f32."""
    N, D = z.shape
    K = w.shape[0]

    if tn is None:
        tn = _pick_tile(N)
    assert tn % 128 == 0

    # Lane-dense layout: batch along lanes (last dim), latent dim on sublanes.
    zT = z.T                                          # [D, N]
    Np = pl.cdiv(N, tn) * tn
    if Np != N:
        zT = jnp.pad(zT, ((0, 0), (0, Np - N)))       # pad batch to tile width
    wT = w.T                                          # [D, K]
    uT = u.T                                          # [D, K]

    kernel = functools.partial(_nf_kernel, K=K)
    outT = pl.pallas_call(
        kernel,
        out_shape=jax.ShapeDtypeStruct((D, Np), z.dtype),
        grid=(Np // tn,),
        in_specs=[
            pl.BlockSpec((D, tn), lambda i: (0, i)),            # z.T batch tile
            pl.BlockSpec((D, K), lambda i: (0, 0)),             # w.T (resident)
            pl.BlockSpec((D, K), lambda i: (0, 0)),             # u.T (resident)
            pl.BlockSpec(memory_space=pltpu.MemorySpace.SMEM),  # b scalars
        ],
        out_specs=pl.BlockSpec((D, tn), lambda i: (0, i)),
        compiler_params=pltpu.CompilerParams(
            dimension_semantics=("parallel",)),
    )(zT, wT, uT, b)

    return outT[:, :N].T                              # back to [N, D]


def normalizing_flow_ref(z, w, u, b):
    # Pure-JAX reference mirroring the PyTorch loop.
    K = w.shape[0]
    for k in range(K):
        s = z @ w[k:k + 1, :].T + b[k]                # [N, 1]
        z = z + u[k:k + 1, :] * jnp.tanh(s)
    return z


if __name__ == "__main__":
    latent_dim = 8
    K = 4
    N = 256   # batch of latent samples (2 grid steps of 128 lanes)

    key = jax.random.PRNGKey(0)
    kz, kw, ku, kb = jax.random.split(key, 4)

    # Deterministic "torch.rand"-style (uniform [0,1)) parameter init.
    z = jax.random.uniform(kz, (N, latent_dim), dtype=jnp.float32)
    w = jax.random.uniform(kw, (K, latent_dim), dtype=jnp.float32)
    u = jax.random.uniform(ku, (K, latent_dim), dtype=jnp.float32)
    b = jax.random.uniform(kb, (K,), dtype=jnp.float32)

    out = normalizing_flow(z, w, u, b)
    out = jax.block_until_ready(out)

    ref = normalizing_flow_ref(z, w, u, b)
    assert out.shape == (N, latent_dim)
    assert jnp.allclose(out, ref, atol=1e-5, rtol=1e-5), "mismatch vs reference"

    print("KERNEL_OK")
</pallas_src>

<mosaic_0001>
module attributes {stable_mosaic.version = 11 : i64} {
  func.func @_nf_kernel(%arg0: i32, %arg1: memref<8x128xf32, #tpu.memory_space<vmem>>, %arg2: memref<8x4xf32, #tpu.memory_space<vmem>>, %arg3: memref<8x4xf32, #tpu.memory_space<vmem>>, %arg4: memref<4xf32, #tpu.memory_space<smem>>, %arg5: memref<8x128xf32, #tpu.memory_space<vmem>>) attributes {dimension_semantics = [#tpu.dimension_semantics<parallel>], iteration_bounds = array<i64: 2>, scalar_prefetch = 0 : i64, scratch_operands = 0 : i64, tpu.core_type = #tpu.core_type<tc>, window_params = [{transform_indices = @transform_0, window_bounds = array<i64: 8, 128>}, {pipeline_mode = #tpu.pipeline_mode<synchronous>, transform_indices = @transform_1, window_bounds = array<i64: 8, 4>}, {pipeline_mode = #tpu.pipeline_mode<synchronous>, transform_indices = @transform_2, window_bounds = array<i64: 8, 4>}, {transform_indices = @transform_3, window_bounds = array<i64: 4>}, {transform_indices = @transform_4, window_bounds = array<i64: 8, 128>}]} {
    %c0 = arith.constant 0 : index
    %c0_0 = arith.constant 0 : index
    %0 = vector.load %arg1[%c0, %c0_0] : memref<8x128xf32, #tpu.memory_space<vmem>>, vector<8x128xf32>
    %c0_1 = arith.constant 0 : index
    %c0_2 = arith.constant 0 : index
    %1 = vector.load %arg2[%c0_1, %c0_2] : memref<8x4xf32, #tpu.memory_space<vmem>>, vector<8x4xf32>
    %c0_3 = arith.constant 0 : index
    %c0_4 = arith.constant 0 : index
    %2 = vector.load %arg3[%c0_3, %c0_4] : memref<8x4xf32, #tpu.memory_space<vmem>>, vector<8x4xf32>
    %3 = vector.extract_strided_slice %1 {offsets = [0, 0], sizes = [8, 1], strides = [1, 1]} : vector<8x4xf32> to vector<8x1xf32>
    %4 = vector.extract_strided_slice %2 {offsets = [0, 0], sizes = [8, 1], strides = [1, 1]} : vector<8x4xf32> to vector<8x1xf32>
    %c0_5 = arith.constant 0 : index
    %5 = memref.load %arg4[%c0_5] : memref<4xf32, #tpu.memory_space<smem>>
    %6 = vector.broadcast %3 : vector<8x1xf32> to vector<8x128xf32>
    %7 = arith.mulf %0, %6 : vector<8x128xf32>
    %cst = arith.constant dense<0.000000e+00> : vector<128xf32>
    %8 = vector.multi_reduction <add>, %7, %cst [0] : vector<8x128xf32> to vector<128xf32>
    %9 = vector.shape_cast %8 : vector<128xf32> to vector<1x128xf32>
    %10 = vector.broadcast %5 : f32 to vector<1x128xf32>
    %11 = arith.addf %9, %10 : vector<1x128xf32>
    %12 = math.tanh %11 : vector<1x128xf32>
    %13 = vector.broadcast %4 : vector<8x1xf32> to vector<8x128xf32>
    %14 = vector.broadcast %12 : vector<1x128xf32> to vector<8x128xf32>
    %15 = arith.mulf %13, %14 : vector<8x128xf32>
    %16 = arith.addf %0, %15 : vector<8x128xf32>
    %17 = vector.extract_strided_slice %1 {offsets = [0, 1], sizes = [8, 1], strides = [1, 1]} : vector<8x4xf32> to vector<8x1xf32>
    %18 = vector.extract_strided_slice %2 {offsets = [0, 1], sizes = [8, 1], strides = [1, 1]} : vector<8x4xf32> to vector<8x1xf32>
    %c1 = arith.constant 1 : index
    %19 = memref.load %arg4[%c1] : memref<4xf32, #tpu.memory_space<smem>>
    %20 = vector.broadcast %17 : vector<8x1xf32> to vector<8x128xf32>
    %21 = arith.mulf %16, %20 : vector<8x128xf32>
    %cst_6 = arith.constant dense<0.000000e+00> : vector<128xf32>
    %22 = vector.multi_reduction <add>, %21, %cst_6 [0] : vector<8x128xf32> to vector<128xf32>
    %23 = vector.shape_cast %22 : vector<128xf32> to vector<1x128xf32>
    %24 = vector.broadcast %19 : f32 to vector<1x128xf32>
    %25 = arith.addf %23, %24 : vector<1x128xf32>
    %26 = math.tanh %25 : vector<1x128xf32>
    %27 = vector.broadcast %18 : vector<8x1xf32> to vector<8x128xf32>
    %28 = vector.broadcast %26 : vector<1x128xf32> to vector<8x128xf32>
    %29 = arith.mulf %27, %28 : vector<8x128xf32>
    %30 = arith.addf %16, %29 : vector<8x128xf32>
    %31 = vector.extract_strided_slice %1 {offsets = [0, 2], sizes = [8, 1], strides = [1, 1]} : vector<8x4xf32> to vector<8x1xf32>
    %32 = vector.extract_strided_slice %2 {offsets = [0, 2], sizes = [8, 1], strides = [1, 1]} : vector<8x4xf32> to vector<8x1xf32>
    %c2 = arith.constant 2 : index
    %33 = memref.load %arg4[%c2] : memref<4xf32, #tpu.memory_space<smem>>
    %34 = vector.broadcast %31 : vector<8x1xf32> to vector<8x128xf32>
    %35 = arith.mulf %30, %34 : vector<8x128xf32>
    %cst_7 = arith.constant dense<0.000000e+00> : vector<128xf32>
    %36 = vector.multi_reduction <add>, %35, %cst_7 [0] : vector<8x128xf32> to vector<128xf32>
    %37 = vector.shape_cast %36 : vector<128xf32> to vector<1x128xf32>
    %38 = vector.broadcast %33 : f32 to vector<1x128xf32>
    %39 = arith.addf %37, %38 : vector<1x128xf32>
    %40 = math.tanh %39 : vector<1x128xf32>
    %41 = vector.broadcast %32 : vector<8x1xf32> to vector<8x128xf32>
    %42 = vector.broadcast %40 : vector<1x128xf32> to vector<8x128xf32>
    %43 = arith.mulf %41, %42 : vector<8x128xf32>
    %44 = arith.addf %30, %43 : vector<8x128xf32>
    %45 = vector.extract_strided_slice %1 {offsets = [0, 3], sizes = [8, 1], strides = [1, 1]} : vector<8x4xf32> to vector<8x1xf32>
    %46 = vector.extract_strided_slice %2 {offsets = [0, 3], sizes = [8, 1], strides = [1, 1]} : vector<8x4xf32> to vector<8x1xf32>
    %c3 = arith.constant 3 : index
    %47 = memref.load %arg4[%c3] : memref<4xf32, #tpu.memory_space<smem>>
    %48 = vector.broadcast %45 : vector<8x1xf32> to vector<8x128xf32>
    %49 = arith.mulf %44, %48 : vector<8x128xf32>
    %cst_8 = arith.constant dense<0.000000e+00> : vector<128xf32>
    %50 = vector.multi_reduction <add>, %49, %cst_8 [0] : vector<8x128xf32> to vector<128xf32>
    %51 = vector.shape_cast %50 : vector<128xf32> to vector<1x128xf32>
    %52 = vector.broadcast %47 : f32 to vector<1x128xf32>
    %53 = arith.addf %51, %52 : vector<1x128xf32>
    %54 = math.tanh %53 : vector<1x128xf32>
    %55 = vector.broadcast %46 : vector<8x1xf32> to vector<8x128xf32>
    %56 = vector.broadcast %54 : vector<1x128xf32> to vector<8x128xf32>
    %57 = arith.mulf %55, %56 : vector<8x128xf32>
    %58 = arith.addf %44, %57 : vector<8x128xf32>
    %c0_9 = arith.constant 0 : index
    %c0_10 = arith.constant 0 : index
    %59 = vector.load %arg5[%c0_9, %c0_10] : memref<8x128xf32, #tpu.memory_space<vmem>>, vector<8x128xf32>
    tpu.vector_store %arg5[%c0_9, %c0_10], %58 {strides = array<i32>} : memref<8x128xf32, #tpu.memory_space<vmem>>, vector<8x128xf32>,
    return
  }
  func.func @transform_0(%arg0: i32) -> (i32, i32) {
    %c0_i32 = arith.constant 0 : i32
    %c0_i32_0 = arith.constant 0 : i32
    return %c0_i32, %arg0 : i32, i32
  }
  func.func @transform_1(%arg0: i32) -> (i32, i32) {
    %c0_i32 = arith.constant 0 : i32
    %c0_i32_0 = arith.constant 0 : i32
    %c0_i32_1 = arith.constant 0 : i32
    return %c0_i32, %c0_i32_0 : i32, i32
  }
  func.func @transform_2(%arg0: i32) -> (i32, i32) {
    %c0_i32 = arith.constant 0 : i32
    %c0_i32_0 = arith.constant 0 : i32
    %c0_i32_1 = arith.constant 0 : i32
    return %c0_i32, %c0_i32_0 : i32, i32
  }
  func.func @transform_3(%arg0: i32) -> i32 {
    %c0_i32 = arith.constant 0 : i32
    %c0_i32_0 = arith.constant 0 : i32
    return %c0_i32 : i32
  }
  func.func @transform_4(%arg0: i32) -> (i32, i32) {
    %c0_i32 = arith.constant 0 : i32
    %c0_i32_0 = arith.constant 0 : i32
    return %c0_i32, %arg0 : i32, i32
  }
}

</mosaic_0001>

<llo_original>
// kernel: tpu_custom_call.1
$region0: #{tpu_custom_call.1}
  #allocation0 [shape = 'u32[]', space=smem, size = 0x4, offset = 0x4, fixed_abs, tag = 'smem constant byte address 0x4 - core index']
  #allocation1 [shape = 'u32[144,128]{1,0:T(1,128)}', space=vmem, size = 0x12000, scoped, tag = 'internal scratch']
  %s0 = inlined_call_operand.vmem [shape: f32[8,256], index: 0, kind: input, shape index: {}]
  %s1 = inlined_call_operand.vmem [shape: f32[8,4], index: 1, kind: input, shape index: {}]
  %s2 = inlined_call_operand.vmem [shape: f32[8,4], index: 2, kind: input, shape index: {}]
  %s3 = inlined_call_operand.vmem [shape: f32[4], index: 3, kind: input, shape index: {}]
  %s4 = inlined_call_operand.hbm [shape: f32[8,256], index: 4, kind: output, shape index: {}]
  %s5 = sld [smem:[#allocation0]]
  $region53: #{tpu_custom_call.1} parent=0
    _
  %s7 = ssub.s32 1, %s5
  %s8 = scalar_select 0, %s7, %s5
  $region1: #{tpu_custom_call.1} parent=0
    #allocation2 [shape = 'u8[512]{0}', space=smem, size = 0x200, scoped, tag = 'input window, operand 3, single buffered']
    #allocation3 [shape = 's32[2]{0}', space=sflag, size = 0x8, scoped, tag = 'scoped memory for tpu_custom_call.1']
    #allocation4 [shape = 's32[2]{0}', space=sflag, size = 0x8, scoped, tag = 'scoped memory for tpu_custom_call.1']
    #allocation5 [shape = 'u8[8192]{0}', space=vmem, size = 0x2000, scoped, tag = 'output window, operand 0']
    %9 = vsyncpa [#allocation4], 0
    %10 = vsyncpa [#allocation3], 0
    %s11 = scalar_lea.sflag [#allocation3], 1
    %12 = vsyncpa %s11, 0
    loop: start=0, step=1, limit=4
    $region2: #{tpu_custom_call.1} parent=1 // loop_pre_header
      _
    $region3: #{tpu_custom_call.1} parent=1 // loop_header
      %s14 = sphi 0, %s18
      %p15 = scmp.ge.s32.totalorder %s14, 4
      %s24 = sphi 0, %s26
      %s27 = sphi 0, %s24
      %s28 = sphi 0, %s27
      %s44 = sphi 0, %s28
      %s48 = sphi 0, %s48
      %s50 = sphi 0, %s48
      %s51 = sphi 0, %s50
      %s65 = sphi 0, %s51
      %s69 = sphi 0, %s69
      %s71 = sphi 0, %s69
      %s72 = sphi 0, %s71
      %s86 = sphi 0, %s72
      %s90 = sphi 0, %s90
      %s92 = sphi 0, %s90
      %s93 = sphi 0, %s92
      %s107 = sphi 0, %s93
      %s113 = sphi 0, %s115
      %s116 = sphi 0, %s113
      %s117 = sphi 0, %s116
      %s133 = sphi 0, %s117
    $region4: #{tpu_custom_call.1} parent=1 // loop_header_branch
      %17 = sbr.rel (%p15) target = $region8
    $region5: #{tpu_custom_call.1} parent=1 // loop_body
      %s19 = ssub.s32 %s14, 1
      %s20 = ssub.s32 %s14, 2
      %s21 = sadd.s32 %s14, 1
      %s22 = ssub.s32 %s14, %s21
      %p23 = scmp.eq.s32.totalorder %s22, 0
      %s25 = sadd.s32 %s24, 1
      %s26 = scalar_select %p23, %s24, %s25
      %p29 = pneg %p23
      %p30 = scmp.eq.s32.totalorder %s14, 1
      %p31 = por %p29, %p30
      %p32 = scmp.ne.s32.totalorder %s24, %s27
      %p33 = scmp.eq.s32.totalorder %s14, 0
      %p34 = por %p32, %p33
      %p35 = scmp.ne.s32.totalorder %s24, %s27
      %p36 = scmp.eq.s32.totalorder %s19, 1
      %p37 = por %p35, %p36
      %p38 = scmp.ne.s32.totalorder %s27, %s28
      %p39 = scmp.eq.s32.totalorder %s19, 0
      %p40 = por %p38, %p39
      %p41 = scmp.ne.s32.totalorder %s27, %s28
      %p42 = scmp.eq.s32.totalorder %s20, 1
      %p43 = por %p41, %p42
      %p45 = scmp.ne.s32.totalorder %s28, %s44
      %p46 = scmp.eq.s32.totalorder %s20, 0
      %p47 = por %p45, %p46
      %s49 = sadd.s32 %s48, 1
      %p52 = scmp.eq.s32.totalorder %s14, 1
      %p53 = scmp.ne.s32.totalorder %s48, %s50
      %p54 = scmp.eq.s32.totalorder %s14, 0
      %p55 = por %p53, %p54
      %p56 = scmp.ne.s32.totalorder %s48, %s50
      %p57 = scmp.eq.s32.totalorder %s19, 1
      %p58 = por %p56, %p57
      %p59 = scmp.ne.s32.totalorder %s50, %s51
      %p60 = scmp.eq.s32.totalorder %s19, 0
      %p61 = por %p59, %p60
      %p62 = scmp.ne.s32.totalorder %s50, %s51
      %p63 = scmp.eq.s32.totalorder %s20, 1
      %p64 = por %p62, %p63
      %p66 = scmp.ne.s32.totalorder %s51, %s65
      %p67 = scmp.eq.s32.totalorder %s20, 0
      %p68 = por %p66, %p67
      %s70 = sadd.s32 %s69, 1
      %p73 = scmp.eq.s32.totalorder %s14, 1
      %p74 = scmp.ne.s32.totalorder %s69, %s71
      %p75 = scmp.eq.s32.totalorder %s14, 0
      %p76 = por %p74, %p75
      %p77 = scmp.ne.s32.totalorder %s69, %s71
      %p78 = scmp.eq.s32.totalorder %s19, 1
      %p79 = por %p77, %p78
      %p80 = scmp.ne.s32.totalorder %s71, %s72
      %p81 = scmp.eq.s32.totalorder %s19, 0
      %p82 = por %p80, %p81
      %p83 = scmp.ne.s32.totalorder %s71, %s72
      %p84 = scmp.eq.s32.totalorder %s20, 1
      %p85 = por %p83, %p84
      %p87 = scmp.ne.s32.totalorder %s72, %s86
      %p88 = scmp.eq.s32.totalorder %s20, 0
      %p89 = por %p87, %p88
      %s91 = sadd.s32 %s90, 1
      %p94 = scmp.eq.s32.totalorder %s14, 1
      %p95 = scmp.ne.s32.totalorder %s90, %s92
      %p96 = scmp.eq.s32.totalorder %s14, 0
      %p97 = por %p95, %p96
      %p98 = scmp.ne.s32.totalorder %s90, %s92
      %p99 = scmp.eq.s32.totalorder %s19, 1
      %p100 = por %p98, %p99
      %p101 = scmp.ne.s32.totalorder %s92, %s93
      %p102 = scmp.eq.s32.totalorder %s19, 0
      %p103 = por %p101, %p102
      %p104 = scmp.ne.s32.totalorder %s92, %s93
      %p105 = scmp.eq.s32.totalorder %s20, 1
      %p106 = por %p104, %p105
      %p108 = scmp.ne.s32.totalorder %s93, %s107
      %p109 = scmp.eq.s32.totalorder %s20, 0
      %p110 = por %p108, %p109
      %s111 = ssub.s32 %s14, %s21
      %p112 = scmp.eq.s32.totalorder %s111, 0
      %s114 = sadd.s32 %s113, 1
      %s115 = scalar_select %p112, %s113, %s114
      %p118 = pneg %p112
      %p119 = scmp.eq.s32.totalorder %s14, 1
      %p120 = por %p118, %p119
      %p121 = scmp.ne.s32.totalorder %s113, %s116
      %p122 = scmp.eq.s32.totalorder %s14, 0
      %p123 = por %p121, %p122
      %p124 = scmp.ne.s32.totalorder %s113, %s116
      %p125 = scmp.eq.s32.totalorder %s19, 1
      %p126 = por %p124, %p125
      %p127 = scmp.ne.s32.totalorder %s116, %s117
      %p128 = scmp.eq.s32.totalorder %s19, 0
      %p129 = por %p127, %p128
      %p130 = scmp.ne.s32.totalorder %s116, %s117
      %p131 = scmp.eq.s32.totalorder %s20, 1
      %p132 = por %p130, %p131
      %p134 = scmp.ne.s32.totalorder %s117, %s133
      %p135 = scmp.eq.s32.totalorder %s20, 0
      %p136 = por %p134, %p135
      %p137 = scmp.le.s32.totalorder 1, %s14
      %p138 = scmp.lt.s32.totalorder %s14, 3
      %p139 = pnand %p137, %p138
      %p140 = pneg %p139
      // Predicated region
      $region9: #{tpu_custom_call.1} parent=5 // pred_check
        _
      $region10: #{tpu_custom_call.1} parent=5 // pred_check_branch
        %142 = sbr.rel (%p139) target = $region12
      $region11: #{tpu_custom_call.1} parent=5 // pred_region
        %s143 = ssub.s32 %s14, 1
        // Predicated region
        $region13: #{tpu_custom_call.1} parent=11 // pred_check
          %p144 = pneg %p61
        $region14: #{tpu_custom_call.1} parent=11 // pred_check_branch
          %146 = sbr.rel (%p144) target = $region16
        $region15: #{tpu_custom_call.1} parent=11 // pred_region
          _
        $region16: #{tpu_custom_call.1} parent=11 // pred_fallthru
          _
        // Predicated region
        $region17: #{tpu_custom_call.1} parent=11 // pred_check
          %p147 = pneg %p82
        $region18: #{tpu_custom_call.1} parent=11 // pred_check_branch
          %149 = sbr.rel (%p147) target = $region20
        $region19: #{tpu_custom_call.1} parent=11 // pred_region
          _
        $region20: #{tpu_custom_call.1} parent=11 // pred_fallthru
          _
        // Predicated region
        $region21: #{tpu_custom_call.1} parent=11 // pred_check
          %p150 = pneg %p103
        $region22: #{tpu_custom_call.1} parent=11 // pred_check_branch
          %152 = sbr.rel (%p150) target = $region24
        $region23: #{tpu_custom_call.1} parent=11 // pred_region
          %s154 = ssub.s32 16, 16
          %155 = vsyncadd [#allocation4], %s154
          %s157 = sshll.u32 %s3, 4
          %s158 = int_to_ptr.vmem [resolvable:$true] %s157
          %160 = dma.vmem_to_smem %s158, 16, [#allocation2], [#allocation4]
        $region24: #{tpu_custom_call.1} parent=11 // pred_fallthru
          _
      $region12: #{tpu_custom_call.1} parent=5 // pred_fallthru
        _
      %p161 = scmp.lt.s32.totalorder %s14, 2
      // Predicated region
      $region25: #{tpu_custom_call.1} parent=5 // pred_check
        %p162 = pneg %p161
      $region26: #{tpu_custom_call.1} parent=5 // pred_check_branch
        %164 = sbr.rel (%p162) target = $region28
      $region27: #{tpu_custom_call.1} parent=5 // pred_region
        // Predicated region
        $region29: #{tpu_custom_call.1} parent=27 // pred_check
          %p165 = pneg %p34
        $region30: #{tpu_custom_call.1} parent=27 // pred_check_branch
          %167 = sbr.rel (%p165) target = $region32
        $region31: #{tpu_custom_call.1} parent=27 // pred_region
          %p168 = scmp.lt.s32.totalorder %s14, 1
          %s169 = scalar_select %p168, %s14, 1
          %s170 = smul.addr %s169, 8
          %s171 = scalar_lea.vmem %s0, %s170
        $region32: #{tpu_custom_call.1} parent=27 // pred_fallthru
          _
      $region28: #{tpu_custom_call.1} parent=5 // pred_fallthru
        _
      %p172 = scmp.le.s32.totalorder 1, %s14
      %p173 = scmp.lt.s32.totalorder %s14, 3
      %p174 = pnand %p172, %p173
      %p175 = pneg %p174
      // Predicated region
      $region33: #{tpu_custom_call.1} parent=5 // pred_check
        _
      $region34: #{tpu_custom_call.1} parent=5 // pred_check_branch
        %177 = sbr.rel (%p174) target = $region36
      $region35: #{tpu_custom_call.1} parent=5 // pred_region
        %s178 = ssub.s32 %s14, 1
        // Predicated region
        $region37: #{tpu_custom_call.1} parent=35 // pred_check
          %p179 = pneg %p103
        $region38: #{tpu_custom_call.1} parent=35 // pred_check_branch
          %181 = sbr.rel (%p179) target = $region40
        $region39: #{tpu_custom_call.1} parent=35 // pred_region
          %182 = dma.done [#allocation4], 16
        $region40: #{tpu_custom_call.1} parent=35 // pred_fallthru
          _
        %183 = sfence
        %p184 = scmp.lt.s32.totalorder %s19, 1
        %s185 = scalar_select %p184, %s19, 1
        %s186 = smul.addr %s185, 8
        %s187 = scalar_lea.vmem %s0, %s186
        %p188 = pneg %p40
        %p189 = pneg %p37
        %p190 = pneg %p61
        %p191 = pneg %p58
        %p192 = pneg %p82
        %p193 = pneg %p79
        %p194 = pneg %p103
        %p195 = pneg %p100
        %p196 = pneg %p129
        %p197 = pneg %p126
        %s198 = sand.u32 %s116, 1
        %s199 = scalar_lea.sflag [#allocation3], %s198
        %s200 = sand.u32 %s116, 1
        %s201 = smul.addr %s200, 8
        %s202 = scalar_lea.vmem [#allocation5], %s201
        %p203 = scmp.lt.s32.totalorder %s19, 1
        %s204 = scalar_select %p203, %s19, 1
        %s205 = smul.addr %s204, 8
        %s206 = scalar_lea.vmem %s0, %s205
        %v207 = vld [vmem:[%s206] sm:$0xff]
        %v208 = vld [vmem:[%s1] sm:$0xff]
        %v209 = vld [vmem:[%s2] sm:$0xff]
        %s210 = sld [smem:[#allocation2]]
        %212 = vset.pattern.permute.xlu0 0
        %213 = vperm.xlu0 %212, %v208
        %v214 = vpop.permute.xlu0 %213
        %v216 = vmul.f32 %v207, %v214
        %v217 = vrot.slane %v216, 4
        %v218 = vadd.f32 %v216, %v217
        %v219 = vrot.slane %v218, 2
        %v220 = vadd.f32 %v218, %v219
        %v221 = vrot.slane %v220, 1
        %v222 = vadd.f32 %v220, %v221
        %v223 = vstv %s210
        %v224 = vadd.f32 %v222, %v223
        %v225 = vtanh.pop %v224
        %227 = vset.pattern.permute.xlu0 0
        %228 = vperm.xlu0 %227, %v209
        %v229 = vpop.permute.xlu0 %228
        %v231 = vmul.f32 %v229, %v225
        %v232 = vadd.f32 %v207, %v231
        %s233 = sld [smem:[#allocation2 + $0x1]]
        %234 = vset.pattern.permute.xlu0 1
        %235 = vperm.xlu0 %234, %v208
        %v236 = vpop.permute.xlu0 %235
        %v238 = vmul.f32 %v232, %v236
        %v239 = vrot.slane %v238, 4
        %v240 = vadd.f32 %v238, %v239
        %v241 = vrot.slane %v240, 2
        %v242 = vadd.f32 %v240, %v241
        %v243 = vrot.slane %v242, 1
        %v244 = vadd.f32 %v242, %v243
        %v245 = vstv %s233
        %v246 = vadd.f32 %v244, %v245
        %v247 = vtanh.pop %v246
        %248 = vset.pattern.permute.xlu0 1
        %249 = vperm.xlu0 %248, %v209
        %v250 = vpop.permute.xlu0 %249
        %v252 = vmul.f32 %v250, %v247
        %v253 = vadd.f32 %v232, %v252
        %s254 = sld [smem:[#allocation2 + $0x2]]
        %255 = vset.pattern.permute.xlu0 2
        %256 = vperm.xlu0 %255, %v208
        %v257 = vpop.permute.xlu0 %256
        %v259 = vmul.f32 %v253, %v257
        %v260 = vrot.slane %v259, 4
        %v261 = vadd.f32 %v259, %v260
        %v262 = vrot.slane %v261, 2
        %v263 = vadd.f32 %v261, %v262
        %v264 = vrot.slane %v263, 1
        %v265 = vadd.f32 %v263, %v264
        %v266 = vstv %s254
        %v267 = vadd.f32 %v265, %v266
        %v268 = vtanh.pop %v267
        %269 = vset.pattern.permute.xlu0 2
        %270 = vperm.xlu0 %269, %v209
        %v271 = vpop.permute.xlu0 %270
        %v273 = vmul.f32 %v271, %v268
        %v274 = vadd.f32 %v253, %v273
        %s275 = sld [smem:[#allocation2 + $0x3]]
        %276 = vset.pattern.permute.xlu0 3
        %277 = vperm.xlu0 %276, %v208
        %v278 = vpop.permute.xlu0 %277
        %v280 = vmul.f32 %v274, %v278
        %v281 = vrot.slane %v280, 4
        %v282 = vadd.f32 %v280, %v281
        %v283 = vrot.slane %v282, 2
        %v284 = vadd.f32 %v282, %v283
        %v285 = vrot.slane %v284, 1
        %v286 = vadd.f32 %v284, %v285
        %v287 = vstv %s275
        %v288 = vadd.f32 %v286, %v287
        %v289 = vtanh.pop %v288
        %290 = vset.pattern.permute.xlu0 3
        %291 = vperm.xlu0 %290, %v209
        %v292 = vpop.permute.xlu0 %291
        %v294 = vmul.f32 %v292, %v289
        %v295 = vadd.f32 %v274, %v294
        %296 = vst [vmem:[%s202] sm:$0xff] %v295
        %s297 = sand.u32 %s116, 1
        %s298 = scalar_lea.sflag [#allocation3], %s297
        %s299 = sand.u32 %s116, 1
        %s300 = smul.addr %s299, 8
        %s301 = scalar_lea.vmem [#allocation5], %s300
        // Predicated region
        $region41: #{tpu_custom_call.1} parent=35 // pred_check
          %p302 = pneg %p126
        $region42: #{tpu_custom_call.1} parent=35 // pred_check_branch
          %304 = sbr.rel (%p302) target = $region44
        $region43: #{tpu_custom_call.1} parent=35 // pred_region
          %s306 = ssub.s32 128, 128
          %307 = vsyncadd %s298, %s306
          %s308 = smul.addr %s19, 128
          %s309 = scalar_lea.hbm %s4, %s308
          %s311 = sshll.u32 %s301, 4
          %s312 = int_to_ptr.vmem [resolvable:$true] %s311
          %314 = dma.vmem_to_hbm [thread:$0]  %s312, 128, %s309, %s298
        $region44: #{tpu_custom_call.1} parent=35 // pred_fallthru
          _
      $region36: #{tpu_custom_call.1} parent=5 // pred_fallthru
        _
      %p315 = scmp.le.s32.totalorder 2, %s14
      // Predicated region
      $region45: #{tpu_custom_call.1} parent=5 // pred_check
        %p316 = pneg %p315
      $region46: #{tpu_custom_call.1} parent=5 // pred_check_branch
        %318 = sbr.rel (%p316) target = $region48
      $region47: #{tpu_custom_call.1} parent=5 // pred_region
        %s319 = ssub.s32 %s14, 2
        // Predicated region
        $region49: #{tpu_custom_call.1} parent=47 // pred_check
          %p320 = pneg %p132
        $region50: #{tpu_custom_call.1} parent=47 // pred_check_branch
          %322 = sbr.rel (%p320) target = $region52
        $region51: #{tpu_custom_call.1} parent=47 // pred_region
          %s323 = sand.u32 %s117, 1
          %s324 = scalar_lea.sflag [#allocation3], %s323
          %s325 = sand.u32 %s117, 1
          %s326 = smul.addr %s325, 8
          %s327 = scalar_lea.vmem [#allocation5], %s326
          %328 = dma.done %s324, 128
        $region52: #{tpu_custom_call.1} parent=47 // pred_fallthru
          _
      $region48: #{tpu_custom_call.1} parent=5 // pred_fallthru
        _
    $region6: #{tpu_custom_call.1} parent=1 // loop_footer
      %s18 = sadd.s32 1, %s14
    $region7: #{tpu_custom_call.1} parent=1 // loop_footer_branch
      %13 = sbr.rel target = $region3
    $region8: #{tpu_custom_call.1} parent=1 // loop_exit
      _
    %329 = vsyncpa [#allocation3], 1
    %s330 = scalar_lea.sflag [#allocation3], 1
    %331 = vsyncpa %s330, 1
    %332 = vsyncpa [#allocation4], 1
    %s333 = scalar_lea.sflag [#allocation4], 1
    %334 = vsyncpa %s333, 1

</llo_original>
